<compile_context>
chip_gen: v7x
topology: tpu7x:2x2x1
jax: 0.10.0
libtpu: 0.0.40
codegen_flags: <defaults>
</compile_context>

<pallas_src>
from functools import partial

import jax
import jax.numpy as jnp
from jax.experimental import pallas as pl
from jax.experimental.pallas import tpu as pltpu

_LANE = 128                    # vreg lane width
_MAX_BLOCK_ROWS = 4096         # (4096, 128) f32 tile = 2 MiB per buffer
_MIN_PALLAS_ELEMS = 1 << 20    # below this, fused XLA sigmoid beats a Pallas launch


def _round_up(n, m):
    return ((n + m - 1) // m) * m


def _sublane_for(dtype):
    # f32 -> 8, bf16 -> 16, int8/fp8 -> 32 rows per packed sublane tile.
    return max(8, 32 // jnp.dtype(dtype).itemsize)


def _choose_block_rows(rows, sublane):
    """Pick the row tile: as large as possible (amortize ~0.35us/grid-step),
    but with >= 2 and preferably an even number of grid steps so both v7x
    TensorCores get balanced work."""
    if rows <= 2 * sublane:
        return rows                      # single whole-array block (full dim => no (8,128) constraint)
    steps = pl.cdiv(rows, _MAX_BLOCK_ROWS)
    if steps == 1:
        steps = 2                        # make sure the grid has at least 2 steps
    elif steps % 2:
        steps += 1                       # even split across 2 TCs on v7x
    return _round_up(pl.cdiv(rows, steps), sublane)


def _sigmoid_bias_kernel(bias_ref, x_ref, o_ref):
    # bias_ref: SMEM (1,) f32 scalar;  x_ref / o_ref: (block_rows, 128) VMEM tiles.
    z = x_ref[...].astype(jnp.float32) + bias_ref[0]
    # jax.nn.sigmoid keeps the transcendental on the EUP; kernel is HBM-bound.
    o_ref[...] = jax.nn.sigmoid(z).astype(o_ref.dtype)


@jax.jit
def _sigmoid_bias_pallas(x, bias):
    """Lane-dense relayout + tiled sigmoid(x + bias). Shapes are static here,
    so all padding / tiling decisions are trace-time Python."""
    orig_shape = x.shape
    total = x.size
    sublane = _sublane_for(x.dtype)

    x_flat = x.reshape(-1)
    lane_pad = (-total) % _LANE          # pad only to the 128-lane boundary
    if lane_pad:
        x_flat = jnp.pad(x_flat, (0, lane_pad))
    rows = x_flat.shape[0] // _LANE
    x2d = x_flat.reshape(rows, _LANE)

    block_rows = _choose_block_rows(rows, sublane)
    grid = (pl.cdiv(rows, block_rows),)  # ragged last block handled by Pallas masking

    bias32 = bias.astype(jnp.float32).reshape(1)

    n_elems = rows * _LANE
    itemsize = jnp.dtype(x.dtype).itemsize
    extra_kwargs = {}
    if lane_pad:
        # The jnp.pad already materialized a private buffer for x2d; reuse it
        # as the output to drop one full-size HBM allocation.
        extra_kwargs["input_output_aliases"] = {1: 0}

    out2d = pl.pallas_call(
        _sigmoid_bias_kernel,
        out_shape=jax.ShapeDtypeStruct((rows, _LANE), x.dtype),
        grid_spec=pl.GridSpec(
            grid=grid,
            in_specs=[
                pl.BlockSpec(memory_space=pltpu.MemorySpace.SMEM),    # bias scalar
                pl.BlockSpec((block_rows, _LANE), lambda i: (i, 0)),  # lane-dense tile
            ],
            out_specs=pl.BlockSpec((block_rows, _LANE), lambda i: (i, 0)),
        ),
        compiler_params=pltpu.CompilerParams(
            dimension_semantics=("parallel",),     # independent row tiles
            vmem_limit_bytes=32 * 1024 * 1024,     # explicit; safe on v5e/v6e/v7x
        ),
        cost_estimate=pl.CostEstimate(
            flops=n_elems,
            transcendentals=n_elems,
            bytes_accessed=2 * n_elems * itemsize,
        ),
        **extra_kwargs,
    )(bias32, x2d)

    out_flat = out2d.reshape(-1)
    if lane_pad:
        out_flat = out_flat[:total]
    return out_flat.reshape(orig_shape)


def prediction_layer(x, bias=None, task="binary", use_bias=True,
                     min_pallas_elems=_MIN_PALLAS_ELEMS):
    """Pallas implementation of PredictionLayer.forward.

    x:    logits, typically (B, 1) float32 (any shape is accepted)
    bias: (1,) scalar parameter (required if use_bias=True)
    """
    if task not in ("binary", "multiclass", "regression"):
        raise ValueError("task must be binary,multiclass or regression")

    if use_bias:
        if bias is None:
            raise ValueError("use_bias=True but no bias parameter was given")
        bias = bias.astype(x.dtype)
    else:
        bias = jnp.zeros((1,), dtype=x.dtype)

    if task != "binary":
        # Plain scalar bias add / identity — let XLA fuse it into the producer;
        # a standalone Pallas kernel here is pure launch + HBM round-trip.
        return x + bias if use_bias else x

    if x.size < min_pallas_elems:
        # Typical CTR heads are small (B, 1): a fused XLA sigmoid beats a
        # single-block Pallas launch plus relayout.
        return jax.nn.sigmoid(x + bias) if use_bias else jax.nn.sigmoid(x)

    return _sigmoid_bias_pallas(x, bias)


if __name__ == "__main__":
    key = jax.random.PRNGKey(0)

    # Small shape consistent with the module: CTR-head logits of shape (batch, 1).
    batch = 8
    x = jax.random.normal(key, (batch, 1), dtype=jnp.float32)
    bias = jnp.zeros((1,), dtype=jnp.float32)   # init exactly as in __init__
    ref = jax.nn.sigmoid(x + bias)

    # Force the Pallas path at this small shape (default heuristic would use fused XLA).
    out = jax.block_until_ready(
        prediction_layer(x, bias, task="binary", use_bias=True, min_pallas_elems=0))
    assert out.shape == x.shape and out.dtype == x.dtype
    assert jnp.allclose(out, ref, atol=1e-6), "mismatch vs reference (small batch, Pallas)"

    # Default heuristic path (small -> fused XLA) must match too.
    out_auto = jax.block_until_ready(prediction_layer(x, bias, task="binary", use_bias=True))
    assert jnp.allclose(out_auto, ref, atol=1e-6), "mismatch vs reference (XLA fallback)"

    # Ragged size: pad-to-128 + even 2-step grid + input/output aliasing.
    x_big = jax.random.normal(jax.random.PRNGKey(1), (70_000, 1), dtype=jnp.float32)
    bias2 = jnp.full((1,), 0.3, dtype=jnp.float32)
    out_big = jax.block_until_ready(
        prediction_layer(x_big, bias2, task="binary", use_bias=True, min_pallas_elems=0))
    ref_big = jax.nn.sigmoid(x_big + bias2)
    assert out_big.shape == x_big.shape
    assert jnp.allclose(out_big, ref_big, atol=1e-6), "mismatch vs reference (ragged batch)"

    # Lane-multiple size: no pad, no trailing slice (pure reshape views).
    x_al = jax.random.normal(jax.random.PRNGKey(2), (131_072, 1), dtype=jnp.float32)
    out_al = jax.block_until_ready(
        prediction_layer(x_al, bias2, task="binary", use_bias=True, min_pallas_elems=0))
    assert jnp.allclose(out_al, jax.nn.sigmoid(x_al + bias2), atol=1e-6), \
        "mismatch vs reference (lane-aligned batch)"

    # Non-binary path (identity / bias add, no Pallas call).
    out_reg = prediction_layer(x, bias, task="regression", use_bias=True)
    assert jnp.allclose(out_reg, x + bias, atol=1e-6)

    print("KERNEL_OK")
</pallas_src>

<mosaic_0001>
module attributes {stable_mosaic.version = 11 : i64} {
  func.func @_sigmoid_bias_kernel(%arg0: i32, %arg1: memref<1xf32, #tpu.memory_space<smem>>, %arg2: memref<1x128xf32, #tpu.memory_space<vmem>>, %arg3: memref<1x128xf32, #tpu.memory_space<vmem>>) attributes {dimension_semantics = [#tpu.dimension_semantics<parallel>], iteration_bounds = array<i64: 1>, scalar_prefetch = 0 : i64, scratch_operands = 0 : i64, tpu.core_type = #tpu.core_type<tc>, window_params = [{transform_indices = @transform_0, window_bounds = array<i64: 1>}, {transform_indices = @transform_1, window_bounds = array<i64: 1, 128>}, {transform_indices = @transform_2, window_bounds = array<i64: 1, 128>}]} {
    %c0 = arith.constant 0 : index
    %c0_0 = arith.constant 0 : index
    %0 = vector.load %arg2[%c0, %c0_0] : memref<1x128xf32, #tpu.memory_space<vmem>>, vector<1x128xf32>
    %c0_1 = arith.constant 0 : index
    %1 = memref.load %arg1[%c0_1] : memref<1xf32, #tpu.memory_space<smem>>
    %2 = vector.broadcast %1 : f32 to vector<1x128xf32>
    %3 = arith.addf %0, %2 : vector<1x128xf32>
    %4 = arith.negf %3 : vector<1x128xf32>
    %5 = math.exp %4 : vector<1x128xf32>
    %cst = arith.constant 1.000000e+00 : f32
    %6 = vector.broadcast %cst : f32 to vector<1x128xf32>
    %7 = arith.addf %6, %5 : vector<1x128xf32>
    %8 = arith.divf %6, %7 : vector<1x128xf32>
    %c0_2 = arith.constant 0 : index
    %c0_3 = arith.constant 0 : index
    %9 = vector.load %arg3[%c0_2, %c0_3] : memref<1x128xf32, #tpu.memory_space<vmem>>, vector<1x128xf32>
    tpu.vector_store %arg3[%c0_2, %c0_3], %8 {strides = array<i32>} : memref<1x128xf32, #tpu.memory_space<vmem>>, vector<1x128xf32>,
    return
  }
  func.func @transform_0(%arg0: i32) -> i32 {
    %c0_i32 = arith.constant 0 : i32
    %c0_i32_0 = arith.constant 0 : i32
    return %c0_i32 : i32
  }
  func.func @transform_1(%arg0: i32) -> (i32, i32) {
    %c0_i32 = arith.constant 0 : i32
    %c0_i32_0 = arith.constant 0 : i32
    return %arg0, %c0_i32 : i32, i32
  }
  func.func @transform_2(%arg0: i32) -> (i32, i32) {
    %c0_i32 = arith.constant 0 : i32
    %c0_i32_0 = arith.constant 0 : i32
    return %arg0, %c0_i32 : i32, i32
  }
}

</mosaic_0001>

<llo_original>
// kernel: _sigmoid_bias_pallas.1
$region0: #{_sigmoid_bias_pallas.1}
  #allocation0 [shape = 'u32[]', space=smem, size = 0x4, offset = 0x4, fixed_abs, tag = 'smem constant byte address 0x4 - core index']
  #allocation1 [shape = 'u32[144,128]{1,0:T(1,128)}', space=vmem, size = 0x12000, scoped, tag = 'internal scratch']
  #allocation2 [shape = 'f32[1]{0:T(128)S(6)}', space=smem, size = 0x200, scoped, tag = 'scoped memory for _sigmoid_bias_pallas.1']
  %s0 = inlined_call_operand.<no memory space> [shape: f32[1], index: 0, kind: input, shape index: {}]
  %s1 = inlined_call_operand.vmem [shape: f32[1,128], index: 1, kind: input, shape index: {}, may-alias: {1,2}]
  %s2 = inlined_call_operand.vmem [shape: f32[1,128], index: 2, kind: output, shape index: {}, may-alias: {1,2}]
  %s3 = sld [smem:[#allocation0]]
  $region18: #{_sigmoid_bias_pallas.1} parent=0
    _
  %s5 = ssub.s32 1, %s3
  %s6 = scalar_select 0, %s5, %s3
  %7 = sst [smem:[#allocation2]] %s0
  // Predicated region
  $region2: #{_sigmoid_bias_pallas.1} parent=0 // pred_check
    _
  $region3: #{_sigmoid_bias_pallas.1} parent=0 // pred_check_branch
    %9 = sbr.rel (0) target = $region5
  $region4: #{_sigmoid_bias_pallas.1} parent=0 // pred_region
    _
  $region5: #{_sigmoid_bias_pallas.1} parent=0 // pred_fallthru
    _
  // Predicated region
  $region6: #{_sigmoid_bias_pallas.1} parent=0 // pred_check
    _
  $region7: #{_sigmoid_bias_pallas.1} parent=0 // pred_check_branch
    %11 = sbr.rel (0) target = $region9
  $region8: #{_sigmoid_bias_pallas.1} parent=0 // pred_region
    _
  $region9: #{_sigmoid_bias_pallas.1} parent=0 // pred_fallthru
    _
  %v12 = vld [vmem:[%s1] sm:$0x1]
  %s13 = sld [smem:[#allocation2]]
  %v14 = vstv %s13
  %v15 = vadd.f32 %v12, %v14
  %v16 = vxor.u32 %v15, 2147483648
  %v17 = vmul.f32 %v16, 1.442695
  %v18 = vpow.pop %v17
  %v19 = vadd.f32 %v18, 1.0
  %v20 = vrcp.pop %v19
  %v21 = vmul.f32 1.0, %v20
  %22 = vst [vmem:[%s2] sm:$0x1] %v21
  // Predicated region
  $region10: #{_sigmoid_bias_pallas.1} parent=0 // pred_check
    _
  $region11: #{_sigmoid_bias_pallas.1} parent=0 // pred_check_branch
    %24 = sbr.rel (0) target = $region13
  $region12: #{_sigmoid_bias_pallas.1} parent=0 // pred_region
    _
  $region13: #{_sigmoid_bias_pallas.1} parent=0 // pred_fallthru
    _
  // Predicated region
  $region14: #{_sigmoid_bias_pallas.1} parent=0 // pred_check
    _
  $region15: #{_sigmoid_bias_pallas.1} parent=0 // pred_check_branch
    %26 = sbr.rel (0) target = $region17
  $region16: #{_sigmoid_bias_pallas.1} parent=0 // pred_region
    _
  $region17: #{_sigmoid_bias_pallas.1} parent=0 // pred_fallthru
    _

</llo_original>
